<compile_context>
chip_gen: v5e
topology: v5e:2x2
jax: 0.10.0
libtpu: 0.0.40
codegen_flags: <defaults>
</compile_context>

<pallas_src>
import jax
import jax.numpy as jnp
from jax import lax
from jax.experimental import pallas as pl
from jax.experimental.pallas import tpu as pltpu


def _choose_tile_hw(HW, C, T, itemsize):
    # Keep the double-buffered input block under ~8 MiB: comfortably inside
    # v5e's 16 MiB default scoped VMEM and v7x's 64 MiB physical VMEM, while
    # still giving 512+ lane tiles for realistic rPPG shapes (C~3, T~300).
    budget = 8 * 1024 * 1024
    max_tile = budget // (2 * C * T * itemsize)
    max_tile = max(128, (max_tile // 128) * 128)
    if HW <= max_tile:
        return HW, 1                       # single tile (block dim == full dim)
    return max_tile, pl.cdiv(HW, max_tile)


def _make_mean_center_kernel(C, T, Tp, HW, tile_hw, n_hw):
    inv_hw = 1.0 / float(HW)
    tail_mask = (HW % tile_hw) != 0        # last spatial tile overruns the array

    def kernel(x_ref, xc_ref, acc_ref):
        hw = pl.program_id(1)

        @pl.when(hw == 0)
        def _():
            acc_ref[...] = jnp.zeros_like(acc_ref)

        tile = x_ref[0].astype(jnp.float32)                    # (C, T, tile_hw)
        if tail_mask:
            lane = lax.broadcasted_iota(jnp.int32, (C, T, tile_hw), 2)
            valid = (hw * tile_hw + lane) < HW
            tile = jnp.where(valid, tile, jnp.float32(0.0))
        partial = jnp.sum(tile, axis=-1)                       # (C, T) spatial sum
        acc_ref[:, :T] = acc_ref[:, :T] + partial              # pure-sum accumulator

        @pl.when(hw == n_hw - 1)
        def _():
            m = acc_ref[...] * jnp.float32(inv_hw)             # (C, Tp); pad cols = 0
            mu = jnp.mean(m, axis=0, keepdims=True)            # mean over samples (rows)
            xc_ref[0] = m - mu                                 # lane-dense store

    return kernel


def _pca_second_component(xc, C, T):
    # TODO(synk): sklearn's SVD has no Pallas equivalent; the tiny (C, C)
    # eigendecomposition runs in plain XLA (eigvals of the Gram == squared
    # singular values of Xc).
    g = jnp.einsum("bct,bdt->bcd", xc, xc)             # pad columns contribute 0
    evals, evecs = jnp.linalg.eigh(g)                  # ascending eigenvalues
    evals = evals[:, ::-1]                             # descending
    evecs = evecs[:, :, ::-1]

    lam1 = jnp.maximum(evals[:, 1], 0.0)               # 2nd-largest eigenvalue (B,)
    u1 = evecs[:, :, 1]                                # matching U column       (B, C)

    # sklearn svd_flip (u-based): max-|.| element of each U column made positive.
    idx = jnp.argmax(jnp.abs(u1), axis=1)
    sgn = jnp.sign(jnp.take_along_axis(u1, idx[:, None], axis=1)[:, 0])
    sgn = jnp.where(sgn == 0, jnp.float32(1.0), sgn)

    # components_[1] * explained_variance_[1]
    #   = (u1^T Xc / s1) * (s1^2 / (C-1)) = u1^T Xc * sqrt(lam1) / (C-1)
    scale = sgn * jnp.sqrt(lam1) / jnp.float32(C - 1)
    w = u1 * scale[:, None]                            # (B, C)
    # Tiny matvec: let XLA fuse it with the eigh epilogue (no second pallas_call).
    bvp = jnp.einsum("bc,bct->bt", w, xc)[:, :T]
    return bvp.astype(jnp.float32)


def pca_forward(x):
    B, C, T, H, W = x.shape
    HW = H * W
    x4 = x.reshape(B, C, T, HW)                        # free reshape, original dtype

    Tp = ((T + 127) // 128) * 128                      # lane-dense output width
    itemsize = jnp.dtype(x.dtype).itemsize
    tile_hw, n_hw = _choose_tile_hw(HW, C, T, itemsize)

    kernel = _make_mean_center_kernel(C, T, Tp, HW, tile_hw, n_hw)

    # TODO(synk): if B == 1 on v7x, additionally split T into a second "parallel"
    # grid axis so both TensorCores get work (legal: centering is per T column).
    xc_pad = pl.pallas_call(
        kernel,
        out_shape=jax.ShapeDtypeStruct((B, C, Tp), jnp.float32),
        grid=(B, n_hw),
        in_specs=[pl.BlockSpec((1, C, T, tile_hw), lambda b, h: (b, 0, 0, h))],
        out_specs=pl.BlockSpec((1, C, Tp), lambda b, h: (b, 0, 0)),
        scratch_shapes=[pltpu.VMEM((C, Tp), jnp.float32)],
        compiler_params=pltpu.CompilerParams(
            dimension_semantics=("parallel", "arbitrary"),
            vmem_limit_bytes=32 * 1024 * 1024),
    )(x4)

    return _pca_second_component(xc_pad, C, T)


def _reference(x):
    # Pure-JAX reference with identical math (correctness sanity check).
    B, C, T, H, W = x.shape
    m = jnp.mean(x.astype(jnp.float32), axis=(3, 4))   # (B, C, T)
    xc = m - jnp.mean(m, axis=1, keepdims=True)        # center over samples (channels)
    return _pca_second_component(xc, C, T)


if __name__ == "__main__":
    key = jax.random.PRNGKey(0)
    B, C, T, H, W = 2, 4, 8, 16, 16   # batch, channels (samples), time (features), spatial
    x = jax.random.normal(key, (B, C, T, H, W), dtype=jnp.float32)

    out = pca_forward(x)
    jax.block_until_ready(out)
    assert out.shape == (B, T), out.shape
    assert out.dtype == jnp.float32

    ref = _reference(x)
    assert bool(jnp.allclose(out, ref, rtol=1e-3, atol=1e-5)), (
        float(jnp.max(jnp.abs(out - ref))))
    print("KERNEL_OK")
</pallas_src>

<mosaic_0001>
module attributes {stable_mosaic.version = 11 : i64} {
  func.func @kernel(%arg0: i32, %arg1: i32, %arg2: memref<1x4x8x256xf32, #tpu.memory_space<vmem>>, %arg3: memref<1x4x128xf32, #tpu.memory_space<vmem>>, %arg4: memref<4x128xf32, #tpu.memory_space<vmem>>) attributes {dimension_semantics = [#tpu.dimension_semantics<parallel>, #tpu.dimension_semantics<arbitrary>], iteration_bounds = array<i64: 2, 1>, scalar_prefetch = 0 : i64, scratch_operands = 1 : i64, tpu.core_type = #tpu.core_type<tc>, window_params = [{transform_indices = @transform_0, window_bounds = array<i64: 1, 4, 8, 256>}, {transform_indices = @transform_1, window_bounds = array<i64: 1, 4, 128>}]} {
    %c0_i32 = arith.constant 0 : i32
    %0 = arith.cmpi eq, %arg1, %c0_i32 : i32
    %1 = arith.extui %0 : i1 to i32
    %c0_i32_0 = arith.constant 0 : i32
    %2 = arith.cmpi ne, %1, %c0_i32_0 : i32
    scf.if %2 {
      %cst_10 = arith.constant 0.000000e+00 : f32
      %12 = vector.broadcast %cst_10 : f32 to vector<4x128xf32>
      %c0_11 = arith.constant 0 : index
      %c0_12 = arith.constant 0 : index
      %13 = vector.load %arg4[%c0_11, %c0_12] : memref<4x128xf32, #tpu.memory_space<vmem>>, vector<4x128xf32>
      tpu.vector_store %arg4[%c0_11, %c0_12], %12 {strides = array<i32>} : memref<4x128xf32, #tpu.memory_space<vmem>>, vector<4x128xf32>,
    } else {
    }
    %c0 = arith.constant 0 : index
    %c0_1 = arith.constant 0 : index
    %c0_2 = arith.constant 0 : index
    %c0_3 = arith.constant 0 : index
    %3 = vector.load %arg2[%c0, %c0_1, %c0_2, %c0_3] : memref<1x4x8x256xf32, #tpu.memory_space<vmem>>, vector<1x4x8x256xf32>
    %4 = vector.shape_cast %3 : vector<1x4x8x256xf32> to vector<4x8x256xf32>
    %cst = arith.constant dense<0.000000e+00> : vector<4x8xf32>
    %5 = vector.multi_reduction <add>, %4, %cst [2] : vector<4x8x256xf32> to vector<4x8xf32>
    %c0_4 = arith.constant 0 : index
    %c0_5 = arith.constant 0 : index
    %6 = vector.load %arg4[%c0_4, %c0_5] : memref<4x128xf32, #tpu.memory_space<vmem>>, vector<4x8xf32>
    %7 = arith.addf %6, %5 : vector<4x8xf32>
    %c0_6 = arith.constant 0 : index
    %c0_7 = arith.constant 0 : index
    %8 = vector.load %arg4[%c0_6, %c0_7] : memref<4x128xf32, #tpu.memory_space<vmem>>, vector<4x8xf32>
    tpu.vector_store %arg4[%c0_6, %c0_7], %7 {strides = array<i32>} : memref<4x128xf32, #tpu.memory_space<vmem>>, vector<4x8xf32>,
    %c0_i32_8 = arith.constant 0 : i32
    %9 = arith.cmpi eq, %arg1, %c0_i32_8 : i32
    %10 = arith.extui %9 : i1 to i32
    %c0_i32_9 = arith.constant 0 : i32
    %11 = arith.cmpi ne, %10, %c0_i32_9 : i32
    scf.if %11 {
      %c0_10 = arith.constant 0 : index
      %c0_11 = arith.constant 0 : index
      %12 = vector.load %arg4[%c0_10, %c0_11] : memref<4x128xf32, #tpu.memory_space<vmem>>, vector<4x128xf32>
      %cst_12 = arith.constant 3.906250e-03 : f32
      %13 = vector.broadcast %cst_12 : f32 to vector<4x128xf32>
      %14 = arith.mulf %12, %13 : vector<4x128xf32>
      %cst_13 = arith.constant dense<0.000000e+00> : vector<128xf32>
      %15 = vector.multi_reduction <add>, %14, %cst_13 [0] : vector<4x128xf32> to vector<128xf32>
      %16 = vector.shape_cast %15 : vector<128xf32> to vector<1x128xf32>
      %cst_14 = arith.constant 4.000000e+00 : f32
      %17 = vector.broadcast %cst_14 : f32 to vector<1x128xf32>
      %18 = arith.divf %16, %17 : vector<1x128xf32>
      %19 = vector.broadcast %18 : vector<1x128xf32> to vector<4x128xf32>
      %20 = arith.subf %14, %19 : vector<4x128xf32>
      %c0_15 = arith.constant 0 : index
      %c0_16 = arith.constant 0 : index
      %c0_17 = arith.constant 0 : index
      %21 = vector.load %arg3[%c0_15, %c0_16, %c0_17] : memref<1x4x128xf32, #tpu.memory_space<vmem>>, vector<1x4x128xf32>
      %22 = vector.shape_cast %21 : vector<1x4x128xf32> to vector<4x128xf32>
      %23 = vector.shape_cast %20 : vector<4x128xf32> to vector<1x4x128xf32>
      tpu.vector_store %arg3[%c0_15, %c0_16, %c0_17], %23 {strides = array<i32>} : memref<1x4x128xf32, #tpu.memory_space<vmem>>, vector<1x4x128xf32>,
    } else {
    }
    return
  }
  func.func @transform_0(%arg0: i32, %arg1: i32) -> (i32, i32, i32, i32) {
    %c0_i32 = arith.constant 0 : i32
    %c0_i32_0 = arith.constant 0 : i32
    %c0_i32_1 = arith.constant 0 : i32
    return %arg0, %c0_i32, %c0_i32_0, %arg1 : i32, i32, i32, i32
  }
  func.func @transform_1(%arg0: i32, %arg1: i32) -> (i32, i32, i32) {
    %c0_i32 = arith.constant 0 : i32
    %c0_i32_0 = arith.constant 0 : i32
    %c0_i32_1 = arith.constant 0 : i32
    return %arg0, %c0_i32, %c0_i32_0 : i32, i32, i32
  }
}

</mosaic_0001>

<llo_original>
// kernel: tpu_custom_call.1
$region0: #{tpu_custom_call.1}
  #allocation0 [shape = 'u32[]', space=smem, size = 0x4, offset = 0x4, fixed_abs, tag = 'smem constant byte address 0x4 - core index']
  #allocation1 [shape = 'u32[72,128]{1,0:T(1,128)}', space=vmem, size = 0x9000, scoped, tag = 'internal scratch']
  #allocation2 [shape = 'f32[4,128]{1,0:T(4,128)}', space=vmem, size = 0x800, scoped, tag = 'scratch operand']
  %s0 = inlined_call_operand.hbm [shape: f32[2,4,8,256], index: 0, kind: input, shape index: {}]
  %s1 = inlined_call_operand.hbm [shape: f32[2,4,128], index: 1, kind: output, shape index: {}]
  %s2 = sld [smem:[#allocation0]]
  $region49: #{tpu_custom_call.1} parent=0
    _
  %s4 = ssub.s32 1, %s2
  %s5 = scalar_select 0, %s4, %s2
  $region1: #{tpu_custom_call.1} parent=0
    #allocation3 [shape = 'u8[65536]{0}', space=vmem, size = 0x10000, scoped, tag = 'input window, operand 0']
    #allocation4 [shape = 's32[2]{0}', space=sflag, size = 0x8, scoped, tag = 'scoped memory for tpu_custom_call.1']
    #allocation5 [shape = 's32[2]{0}', space=sflag, size = 0x8, scoped, tag = 'scoped memory for tpu_custom_call.1']
    #allocation6 [shape = 'u8[4096]{0}', space=vmem, size = 0x1000, scoped, tag = 'output window, operand 0']
    %6 = vsyncpa [#allocation4], 0
    %s7 = scalar_lea.sflag [#allocation4], 1
    %8 = vsyncpa %s7, 0
    %9 = vsyncpa [#allocation5], 0
    %s10 = scalar_lea.sflag [#allocation5], 1
    %11 = vsyncpa %s10, 0
    loop: start=0, step=1, limit=4
    $region2: #{tpu_custom_call.1} parent=1 // loop_pre_header
      _
    $region3: #{tpu_custom_call.1} parent=1 // loop_header
      %s13 = sphi 0, %s17
      %p14 = scmp.ge.s32.totalorder %s13, 4
      %s20 = sphi 0, %s32
      %s21 = sphi 0, %s28
      %s22 = sphi 0, %s20
      %s23 = sphi 0, %s21
      %s24 = sphi 0, %s22
      %s25 = sphi 0, %s23
      %s37 = sphi 0, %s39
      %s40 = sphi 0, %s37
      %s41 = sphi 0, %s40
      %s57 = sphi 0, %s41
      %s63 = sphi 0, %s65
      %s66 = sphi 0, %s63
      %s67 = sphi 0, %s66
      %s83 = sphi 0, %s67
    $region4: #{tpu_custom_call.1} parent=1 // loop_header_branch
      %16 = sbr.rel (%p14) target = $region8
    $region5: #{tpu_custom_call.1} parent=1 // loop_body
      %s18 = ssub.s32 %s13, 1
      %s19 = ssub.s32 %s13, 2
      %s26 = sadd.s32 1, %s21
      %p27 = scmp.ge.s32.totalorder %s26, 1
      %s28 = scalar_select %p27, 0, %s26
      %s29 = sadd.s32 1, %s20
      %s30 = scalar_select %p27, %s29, %s20
      %p31 = scmp.ge.s32.totalorder %s30, 2
      %s32 = scalar_select %p31, 0, %s30
      %s33 = ssub.s32 %s20, %s32
      %s34 = ssub.s32 %s21, %s28
      %s35 = sor.u32 %s33, %s34
      %p36 = scmp.eq.s32.totalorder %s35, 0
      %s38 = sadd.s32 %s37, 1
      %s39 = scalar_select %p36, %s37, %s38
      %p42 = pneg %p36
      %p43 = scmp.eq.s32.totalorder %s13, 1
      %p44 = por %p42, %p43
      %p45 = scmp.ne.s32.totalorder %s37, %s40
      %p46 = scmp.eq.s32.totalorder %s13, 0
      %p47 = por %p45, %p46
      %p48 = scmp.ne.s32.totalorder %s37, %s40
      %p49 = scmp.eq.s32.totalorder %s18, 1
      %p50 = por %p48, %p49
      %p51 = scmp.ne.s32.totalorder %s40, %s41
      %p52 = scmp.eq.s32.totalorder %s18, 0
      %p53 = por %p51, %p52
      %p54 = scmp.ne.s32.totalorder %s40, %s41
      %p55 = scmp.eq.s32.totalorder %s19, 1
      %p56 = por %p54, %p55
      %p58 = scmp.ne.s32.totalorder %s41, %s57
      %p59 = scmp.eq.s32.totalorder %s19, 0
      %p60 = por %p58, %p59
      %s61 = ssub.s32 %s20, %s32
      %p62 = scmp.eq.s32.totalorder %s61, 0
      %s64 = sadd.s32 %s63, 1
      %s65 = scalar_select %p62, %s63, %s64
      %p68 = pneg %p62
      %p69 = scmp.eq.s32.totalorder %s13, 1
      %p70 = por %p68, %p69
      %p71 = scmp.ne.s32.totalorder %s63, %s66
      %p72 = scmp.eq.s32.totalorder %s13, 0
      %p73 = por %p71, %p72
      %p74 = scmp.ne.s32.totalorder %s63, %s66
      %p75 = scmp.eq.s32.totalorder %s18, 1
      %p76 = por %p74, %p75
      %p77 = scmp.ne.s32.totalorder %s66, %s67
      %p78 = scmp.eq.s32.totalorder %s18, 0
      %p79 = por %p77, %p78
      %p80 = scmp.ne.s32.totalorder %s66, %s67
      %p81 = scmp.eq.s32.totalorder %s19, 1
      %p82 = por %p80, %p81
      %p84 = scmp.ne.s32.totalorder %s67, %s83
      %p85 = scmp.eq.s32.totalorder %s19, 0
      %p86 = por %p84, %p85
      %p87 = scmp.le.s32.totalorder 1, %s13
      %p88 = scmp.lt.s32.totalorder %s13, 3
      %p89 = pnand %p87, %p88
      %p90 = pneg %p89
      // Predicated region
      $region9: #{tpu_custom_call.1} parent=5 // pred_check
        _
      $region10: #{tpu_custom_call.1} parent=5 // pred_check_branch
        %92 = sbr.rel (%p89) target = $region12
      $region11: #{tpu_custom_call.1} parent=5 // pred_region
        %s93 = ssub.s32 %s13, 1
      $region12: #{tpu_custom_call.1} parent=5 // pred_fallthru
        _
      %p94 = scmp.lt.s32.totalorder %s13, 2
      // Predicated region
      $region13: #{tpu_custom_call.1} parent=5 // pred_check
        %p95 = pneg %p94
      $region14: #{tpu_custom_call.1} parent=5 // pred_check_branch
        %97 = sbr.rel (%p95) target = $region16
      $region15: #{tpu_custom_call.1} parent=5 // pred_region
        // Predicated region
        $region17: #{tpu_custom_call.1} parent=15 // pred_check
          %p98 = pneg %p47
        $region18: #{tpu_custom_call.1} parent=15 // pred_check_branch
          %100 = sbr.rel (%p98) target = $region20
        $region19: #{tpu_custom_call.1} parent=15 // pred_region
          %s101 = sand.u32 %s37, 1
          %s102 = scalar_lea.sflag [#allocation4], %s101
          %s103 = sand.u32 %s37, 1
          %s104 = smul.addr %s103, 64
          %s105 = scalar_lea.vmem [#allocation3], %s104
          %s106 = smul.u32 2, %s21
          %108 = vsyncadd %s102, 0
          %s109 = smul.addr %s20, 8
          %s110 = sadd.s32 %s106, %s109
          %s111 = smul.addr %s110, 8
          %s112 = scalar_lea.hbm %s0, %s111
          %s113 = sshll.u32 %s112, 4
          %s114 = int_to_ptr.hbm [resolvable:$true] %s113
          %s115 = sshll.u32 %s105, 4
          %s116 = int_to_ptr.vmem [resolvable:$true] %s115
          %121 = dma.hbm_to_vmem [thread:$0]  %s114, 1024, %s116, %s102, 256, 256, 16
        $region20: #{tpu_custom_call.1} parent=15 // pred_fallthru
          _
      $region16: #{tpu_custom_call.1} parent=5 // pred_fallthru
        _
      %p122 = scmp.le.s32.totalorder 1, %s13
      %p123 = scmp.lt.s32.totalorder %s13, 3
      %p124 = pnand %p122, %p123
      %p125 = pneg %p124
      // Predicated region
      $region21: #{tpu_custom_call.1} parent=5 // pred_check
        _
      $region22: #{tpu_custom_call.1} parent=5 // pred_check_branch
        %127 = sbr.rel (%p124) target = $region24
      $region23: #{tpu_custom_call.1} parent=5 // pred_region
        %s128 = ssub.s32 %s13, 1
        %s129 = sand.u32 %s40, 1
        %s130 = scalar_lea.sflag [#allocation4], %s129
        %s131 = sand.u32 %s40, 1
        %s132 = smul.addr %s131, 64
        %s133 = scalar_lea.vmem [#allocation3], %s132
        // Predicated region
        $region25: #{tpu_custom_call.1} parent=23 // pred_check
          %p134 = pneg %p53
        $region26: #{tpu_custom_call.1} parent=23 // pred_check_branch
          %136 = sbr.rel (%p134) target = $region28
        $region27: #{tpu_custom_call.1} parent=23 // pred_region
          %138 = dma.done %s130, 1024
        $region28: #{tpu_custom_call.1} parent=23 // pred_fallthru
          _
        %s139 = sand.u32 %s40, 1
        %s140 = scalar_lea.sflag [#allocation4], %s139
        %s141 = sand.u32 %s40, 1
        %s142 = smul.addr %s141, 64
        %s143 = scalar_lea.vmem [#allocation3], %s142
        %p144 = pneg %p53
        %p145 = pneg %p50
        %p146 = pneg %p79
        %p147 = pneg %p76
        %s148 = sand.u32 %s66, 1
        %s149 = scalar_lea.sflag [#allocation5], %s148
        %s150 = sand.u32 %s66, 1
        %s151 = smul.addr %s150, 4
        %s152 = scalar_lea.vmem [#allocation6], %s151
        %s153 = smul.u32 2, %s23
        %p154 = scmp.eq.s32.totalorder %s23, 0
        // Predicated region
        $region29: #{tpu_custom_call.1} parent=23 // pred_check
          %p155 = pneg %p154
        $region30: #{tpu_custom_call.1} parent=23 // pred_check_branch
          %157 = sbr.rel (%p155) target = $region32
        $region31: #{tpu_custom_call.1} parent=23 // pred_region
          %158 = vst [vmem:[#allocation2] sm:$0xf] 0.0
        $region32: #{tpu_custom_call.1} parent=23 // pred_fallthru
          _
        %v159 = vld [vmem:[%s133] sm:$0xff]
        %v160 = vld [vmem:[%s133 + $0x8] sm:$0xff]
        %v161 = vld [vmem:[%s133 + $0x10] sm:$0xff]
        %v162 = vld [vmem:[%s133 + $0x18] sm:$0xff]
        %v163 = vld [vmem:[%s133 + $0x20] sm:$0xff]
        %v164 = vld [vmem:[%s133 + $0x28] sm:$0xff]
        %v165 = vld [vmem:[%s133 + $0x30] sm:$0xff]
        %v166 = vld [vmem:[%s133 + $0x38] sm:$0xff]
        %v167 = vadd.f32 %v159, %v160
        %168 = vadd.xlane.f32.xlu0 %v167
        %v169 = vpop.xlane.xlu0 %168
        %v170 = vadd.f32 %v161, %v162
        %171 = vadd.xlane.f32.xlu0 %v170
        %v172 = vpop.xlane.xlu0 %171
        %v173 = vadd.f32 %v163, %v164
        %174 = vadd.xlane.f32.xlu0 %v173
        %v175 = vpop.xlane.xlu0 %174
        %v176 = vadd.f32 %v165, %v166
        %177 = vadd.xlane.f32.xlu0 %v176
        %v178 = vpop.xlane.xlu0 %177
        %v179 = vld [vmem:[#allocation2] sm:$0xf]
        %v184 = vlaneseq
        %v185 = vand.u32 %v184, 127
        %v186 = vperm.slane %v169, %v185
        %v187 = vperm.slane %v172, %v185
        %v188 = vperm.slane %v175, %v185
        %v189 = vperm.slane %v178, %v185
        %vm190 = vcmask 1041409
        %v191 = vsel %vm190, %v187, %v186
        %vm192 = vcmask 1042434
        %v193 = vsel %vm192, %v188, %v191
        %vm194 = vcmask 1043459
        %v195 = vsel %vm194, %v189, %v193
        %v197 = vadd.f32 %v179, %v195
        %vm198 = vcmask 60416
        %199 = vst.msk [vmem:[#allocation2] sm:$0xf] %vm198, %v197
        // Predicated region
        $region33: #{tpu_custom_call.1} parent=23 // pred_check
          %p200 = pneg %p154
        $region34: #{tpu_custom_call.1} parent=23 // pred_check_branch
          %202 = sbr.rel (%p200) target = $region36
        $region35: #{tpu_custom_call.1} parent=23 // pred_region
          %v203 = vld [vmem:[#allocation2] sm:$0xf]
          %v204 = vmul.f32 %v203, 0.00390625
          %vm205 = vcmask 1043456
          %v206 = vsel %vm205, %v204, 0.0
          %v207 = vrot.slane %v206, 4
          %v208 = vadd.f32 %v206, %v207
          %v209 = vrot.slane %v208, 2
          %v210 = vadd.f32 %v208, %v209
          %v211 = vrot.slane %v210, 1
          %v212 = vadd.f32 %v210, %v211
          %v213 = vrcp.pop 4.0
          %v214 = vmul.f32 4.0, %v213
          %v215 = vsub.f32 1.0, %v214
          %v216 = vmul.f32 %v213, %v215
          %v217 = vadd.f32 %v213, %v216
          %vm218 = vweird.f32 %v213
          %v219 = vsel %vm218, %v213, %v217
          %v220 = vmul.f32 %v212, %v219
          %v221 = vsub.f32 %v204, %v220
          %222 = vst [vmem:[%s152] sm:$0xf] %v221
        $region36: #{tpu_custom_call.1} parent=23 // pred_fallthru
          _
        %s223 = sand.u32 %s66, 1
        %s224 = scalar_lea.sflag [#allocation5], %s223
        %s225 = sand.u32 %s66, 1
        %s226 = smul.addr %s225, 4
        %s227 = scalar_lea.vmem [#allocation6], %s226
        // Predicated region
        $region37: #{tpu_custom_call.1} parent=23 // pred_check
          %p228 = pneg %p76
        $region38: #{tpu_custom_call.1} parent=23 // pred_check_branch
          %230 = sbr.rel (%p228) target = $region40
        $region39: #{tpu_custom_call.1} parent=23 // pred_region
          %232 = vsyncadd %s224, 0
          %s233 = smul.addr %s22, 4
          %s234 = scalar_lea.hbm %s1, %s233
          %s236 = sshll.u32 %s227, 4
          %s237 = int_to_ptr.vmem [resolvable:$true] %s236
          %s238 = sshll.u32 %s234, 4
          %s239 = int_to_ptr.hbm [resolvable:$true] %s238
          %241 = dma.vmem_to_hbm [thread:$0]  %s237, 64, %s239, %s224
        $region40: #{tpu_custom_call.1} parent=23 // pred_fallthru
          _
      $region24: #{tpu_custom_call.1} parent=5 // pred_fallthru
        _
      %p242 = scmp.le.s32.totalorder 2, %s13
      // Predicated region
      $region41: #{tpu_custom_call.1} parent=5 // pred_check
        %p243 = pneg %p242
      $region42: #{tpu_custom_call.1} parent=5 // pred_check_branch
        %245 = sbr.rel (%p243) target = $region44
      $region43: #{tpu_custom_call.1} parent=5 // pred_region
        %s246 = ssub.s32 %s13, 2
        // Predicated region
        $region45: #{tpu_custom_call.1} parent=43 // pred_check
          %p247 = pneg %p82
        $region46: #{tpu_custom_call.1} parent=43 // pred_check_branch
          %249 = sbr.rel (%p247) target = $region48
        $region47: #{tpu_custom_call.1} parent=43 // pred_region
          %s250 = sand.u32 %s67, 1
          %s251 = scalar_lea.sflag [#allocation5], %s250
          %s252 = sand.u32 %s67, 1
          %s253 = smul.addr %s252, 4
          %s254 = scalar_lea.vmem [#allocation6], %s253
          %256 = dma.done %s251, 64
        $region48: #{tpu_custom_call.1} parent=43 // pred_fallthru
          _
      $region44: #{tpu_custom_call.1} parent=5 // pred_fallthru
        _
    $region6: #{tpu_custom_call.1} parent=1 // loop_footer
      %s17 = sadd.s32 1, %s13
    $region7: #{tpu_custom_call.1} parent=1 // loop_footer_branch
      %12 = sbr.rel target = $region3
    $region8: #{tpu_custom_call.1} parent=1 // loop_exit
      _
    %257 = vsyncpa [#allocation4], 1
    %s258 = scalar_lea.sflag [#allocation4], 1
    %259 = vsyncpa %s258, 1
    %260 = vsyncpa [#allocation5], 1
    %s261 = scalar_lea.sflag [#allocation5], 1
    %262 = vsyncpa %s261, 1

</llo_original>
